<compile_context>
chip_gen: v6e
topology: v6e:2x2x1
jax: 0.10.0
libtpu: 0.0.40
codegen_flags: <defaults>
</compile_context>

<pallas_src>
import jax
import jax.numpy as jnp
from jax.experimental import pallas as pl
from jax.experimental.pallas import tpu as pltpu

INPUT_SIZE = 10
NUM_CLASSES = 5
DROPOUT_P = 0.5
KEEP_SCALE = 1.0 / (1.0 - DROPOUT_P)
# keep iff bits >= p * 2^32  ->  P(keep) = 1 - p   (for p=0.5 this is the top bit)
KEEP_THRESHOLD = int(DROPOUT_P * (1 << 32))

TILE_B = 1024  # multiple of 8; ~0.5 MiB per padded input buffer -> fine on v5e/v6e/v7x


def fused_dropout_linear_kernel(x_ref, bits_ref, w_ref, b_ref, o_ref):
    x = x_ref[...]                       # (TB, INPUT_SIZE) f32
    bits = bits_ref[...]                 # (TB, INPUT_SIZE) u32

    # Inverted dropout via integer threshold on raw random bits.
    keep = bits >= jnp.uint32(KEEP_THRESHOLD)
    dropped = jnp.where(keep, x * KEEP_SCALE, 0.0)

    # y = dropped @ W^T + b, contracting the last dim of both operands so the
    # (5, 10) weight feeds the MXU without an in-kernel transpose.
    out = jax.lax.dot_general(
        dropped, w_ref[...],
        dimension_numbers=(((1,), (1,)), ((), ())),
        preferred_element_type=jnp.float32,
    )
    o_ref[...] = out + b_ref[...]        # b_ref is (1, NUM_CLASSES), broadcasts


def mynet_forward(x, w, b, key):
    """x: (INPUT_SIZE,) or (B, INPUT_SIZE); w: (NUM_CLASSES, INPUT_SIZE); b: (NUM_CLASSES,)."""
    squeeze = x.ndim == 1
    if squeeze:
        x = x[None, :]
    B = x.shape[0]

    x = x.astype(jnp.float32)
    w = w.astype(jnp.float32)
    b2 = b.reshape(1, NUM_CLASSES).astype(jnp.float32)

    # Batch tiling: single full-array block for small B, otherwise 1024-row
    # tiles (pad B up to a tile multiple; padded rows are sliced off below).
    if B <= TILE_B:
        tb = B
        b_pad = B
    else:
        tb = TILE_B
        b_pad = -(-B // tb) * tb
        if b_pad != B:
            x = jnp.pad(x, ((0, b_pad - B), (0, 0)))
    num_tiles = b_pad // tb

    # Independent random bits for every row (and hence every tile).
    bits = jax.random.bits(key, (b_pad, INPUT_SIZE), jnp.uint32)

    out = pl.pallas_call(
        fused_dropout_linear_kernel,
        out_shape=jax.ShapeDtypeStruct((b_pad, NUM_CLASSES), jnp.float32),
        grid=(num_tiles,),
        in_specs=[
            pl.BlockSpec((tb, INPUT_SIZE), lambda i: (i, 0)),           # x tile
            pl.BlockSpec((tb, INPUT_SIZE), lambda i: (i, 0)),           # rng bits tile
            pl.BlockSpec((NUM_CLASSES, INPUT_SIZE), lambda i: (0, 0)),  # W (replicated)
            pl.BlockSpec((1, NUM_CLASSES), lambda i: (0, 0)),           # b (replicated)
        ],
        out_specs=pl.BlockSpec((tb, NUM_CLASSES), lambda i: (i, 0)),
        compiler_params=pltpu.CompilerParams(
            dimension_semantics=("parallel",),
        ),
        cost_estimate=pl.CostEstimate(
            flops=2 * b_pad * INPUT_SIZE * NUM_CLASSES,
            bytes_accessed=(2 * b_pad * INPUT_SIZE * 4      # x + bits
                            + b_pad * NUM_CLASSES * 4       # output
                            + NUM_CLASSES * INPUT_SIZE * 4  # W
                            + NUM_CLASSES * 4),             # b
            transcendentals=0,
        ),
    )(x, bits, w, b2)

    out = out[:B]
    return out[0] if squeeze else out


if __name__ == "__main__":
    key = jax.random.PRNGKey(0)
    kw, kb, kd1, kd2, kd3 = jax.random.split(key, 5)

    # Deterministic nn.Linear-style init (uniform in +/- 1/sqrt(fan_in)).
    bound = 1.0 / (INPUT_SIZE ** 0.5)
    w = jax.random.uniform(kw, (NUM_CLASSES, INPUT_SIZE), jnp.float32, -bound, bound)
    b = jax.random.uniform(kb, (NUM_CLASSES,), jnp.float32, -bound, bound)

    # Same example input as the PyTorch snippet: arange(0, 10) float, shape (10,).
    x = jnp.arange(0, INPUT_SIZE, dtype=jnp.float32)

    y = jax.block_until_ready(mynet_forward(x, w, b, kd1))
    assert y.shape == (NUM_CLASSES,)
    assert bool(jnp.all(jnp.isfinite(y)))

    # Small batched call: (B=2, 10) -> (2, 5).
    xb = jnp.stack([x, x + 1.0])
    yb = jax.block_until_ready(mynet_forward(xb, w, b, kd2))
    assert yb.shape == (2, NUM_CLASSES)
    assert bool(jnp.all(jnp.isfinite(yb)))

    # Exercise the multi-tile grid + padding path (still tiny: 2050 x 10 f32).
    xl = jnp.tile(x, (2050, 1))
    yl = jax.block_until_ready(mynet_forward(xl, w, b, kd3))
    assert yl.shape == (2050, NUM_CLASSES)
    assert bool(jnp.all(jnp.isfinite(yl)))

    print("KERNEL_OK")
</pallas_src>

<mosaic_0001>
module attributes {stable_mosaic.version = 11 : i64} {
  func.func @fused_dropout_linear_kernel(%arg0: i32, %arg1: memref<1x10xf32, #tpu.memory_space<vmem>>, %arg2: memref<1x10xi32, #tpu.memory_space<vmem>>, %arg3: memref<5x10xf32, #tpu.memory_space<vmem>>, %arg4: memref<1x5xf32, #tpu.memory_space<vmem>>, %arg5: memref<1x5xf32, #tpu.memory_space<vmem>>) attributes {dimension_semantics = [#tpu.dimension_semantics<parallel>], iteration_bounds = array<i64: 1>, scalar_prefetch = 0 : i64, scratch_operands = 0 : i64, tpu.core_type = #tpu.core_type<tc>, window_params = [{transform_indices = @transform_0, window_bounds = array<i64: 1, 10>}, {transform_indices = @transform_1, window_bounds = array<i64: 1, 10>}, {pipeline_mode = #tpu.pipeline_mode<synchronous>, transform_indices = @transform_2, window_bounds = array<i64: 5, 10>}, {pipeline_mode = #tpu.pipeline_mode<synchronous>, transform_indices = @transform_3, window_bounds = array<i64: 1, 5>}, {transform_indices = @transform_4, window_bounds = array<i64: 1, 5>}]} {
    %c0 = arith.constant 0 : index
    %c0_0 = arith.constant 0 : index
    %0 = vector.load %arg1[%c0, %c0_0] : memref<1x10xf32, #tpu.memory_space<vmem>>, vector<1x10xf32>
    %c0_1 = arith.constant 0 : index
    %c0_2 = arith.constant 0 : index
    %1 = vector.load %arg2[%c0_1, %c0_2] : memref<1x10xi32, #tpu.memory_space<vmem>>, vector<1x10xi32>
    %c-2147483648_i32 = arith.constant -2147483648 : i32
    %2 = vector.broadcast %c-2147483648_i32 : i32 to vector<1x10xi32>
    %3 = arith.cmpi uge, %1, %2 : vector<1x10xi32>
    %cst = arith.constant 2.000000e+00 : f32
    %4 = vector.broadcast %cst : f32 to vector<1x10xf32>
    %5 = arith.mulf %0, %4 : vector<1x10xf32>
    %cst_3 = arith.constant 0.000000e+00 : f32
    %6 = vector.broadcast %cst_3 : f32 to vector<1x10xf32>
    %7 = arith.select %3, %5, %6 : vector<1x10xi1>, vector<1x10xf32>
    %c0_4 = arith.constant 0 : index
    %c0_5 = arith.constant 0 : index
    %8 = vector.load %arg3[%c0_4, %c0_5] : memref<5x10xf32, #tpu.memory_space<vmem>>, vector<5x10xf32>
    %cst_6 = arith.constant dense<0.000000e+00> : vector<1x5xf32>
    %9 = tpu.matmul %7, %8, %cst_6 {dimension_numbers = #tpu.dot_dimension_numbers<[1], [1], [0], [0], [0, 0, 1, 0], [], []>} : vector<1x10xf32>, vector<5x10xf32>, vector<1x5xf32> -> vector<1x5xf32>
    %c0_7 = arith.constant 0 : index
    %c0_8 = arith.constant 0 : index
    %10 = vector.load %arg4[%c0_7, %c0_8] : memref<1x5xf32, #tpu.memory_space<vmem>>, vector<1x5xf32>
    %11 = arith.addf %9, %10 : vector<1x5xf32>
    %c0_9 = arith.constant 0 : index
    %c0_10 = arith.constant 0 : index
    %12 = vector.load %arg5[%c0_9, %c0_10] : memref<1x5xf32, #tpu.memory_space<vmem>>, vector<1x5xf32>
    tpu.vector_store %arg5[%c0_9, %c0_10], %11 {strides = array<i32>} : memref<1x5xf32, #tpu.memory_space<vmem>>, vector<1x5xf32>,
    return
  }
  func.func @transform_0(%arg0: i32) -> (i32, i32) {
    %c0_i32 = arith.constant 0 : i32
    %c0_i32_0 = arith.constant 0 : i32
    return %arg0, %c0_i32 : i32, i32
  }
  func.func @transform_1(%arg0: i32) -> (i32, i32) {
    %c0_i32 = arith.constant 0 : i32
    %c0_i32_0 = arith.constant 0 : i32
    return %arg0, %c0_i32 : i32, i32
  }
  func.func @transform_2(%arg0: i32) -> (i32, i32) {
    %c0_i32 = arith.constant 0 : i32
    %c0_i32_0 = arith.constant 0 : i32
    %c0_i32_1 = arith.constant 0 : i32
    return %c0_i32, %c0_i32_0 : i32, i32
  }
  func.func @transform_3(%arg0: i32) -> (i32, i32) {
    %c0_i32 = arith.constant 0 : i32
    %c0_i32_0 = arith.constant 0 : i32
    %c0_i32_1 = arith.constant 0 : i32
    return %c0_i32, %c0_i32_0 : i32, i32
  }
  func.func @transform_4(%arg0: i32) -> (i32, i32) {
    %c0_i32 = arith.constant 0 : i32
    %c0_i32_0 = arith.constant 0 : i32
    return %arg0, %c0_i32 : i32, i32
  }
}

</mosaic_0001>

<llo_original>
// kernel: tpu_custom_call.1
$region0: #{tpu_custom_call.1}
  #allocation0 [shape = 'u32[]', space=smem, size = 0x4, offset = 0x4, fixed_abs, tag = 'smem constant byte address 0x4 - core index']
  #allocation1 [shape = 'u32[144,128]{1,0:T(1,128)}', space=vmem, size = 0x12000, scoped, tag = 'internal scratch']
  %s0 = inlined_call_operand.hbm [shape: f32[1,10], index: 0, kind: input, shape index: {}]
  %s1 = inlined_call_operand.vmem [shape: u32[1,10], index: 1, kind: input, shape index: {}]
  %s2 = inlined_call_operand.hbm [shape: f32[5,10], index: 2, kind: input, shape index: {}]
  %s3 = inlined_call_operand.vmem [shape: f32[1,5], index: 3, kind: input, shape index: {}]
  %s4 = inlined_call_operand.hbm [shape: f32[1,5], index: 4, kind: output, shape index: {}]
  %s5 = sld [smem:[#allocation0]]
  $region34: #{tpu_custom_call.1} parent=0
    _
  %s7 = ssub.s32 1, %s5
  %s8 = scalar_select 0, %s7, %s5
  $region1: #{tpu_custom_call.1} parent=0
    #allocation2 [shape = 'u8[512]{0}', space=vmem, size = 0x400, scoped, tag = 'input window, operand 0, single buffered']
    #allocation3 [shape = 's32[1]{0}', space=sflag, size = 0x4, scoped, tag = 'scoped memory for tpu_custom_call.1']
    #allocation4 [shape = 's32[1]{0}', space=sflag, size = 0x4, scoped, tag = 'scoped memory for tpu_custom_call.1']
    #allocation5 [shape = 'u8[4096]{0}', space=vmem, size = 0x1000, scoped, tag = 'input window, operand 2, single buffered']
    #allocation6 [shape = 's32[1]{0}', space=sflag, size = 0x4, scoped, tag = 'scoped memory for tpu_custom_call.1']
    #allocation7 [shape = 'u8[512]{0}', space=vmem, size = 0x400, scoped, tag = 'output window, operand 0, single buffered']
    %9 = vsyncpa [#allocation3], 0
    %10 = vsyncpa [#allocation6], 0
    %11 = vsyncpa [#allocation4], 0
    // Predicated region
    $region2: #{tpu_custom_call.1} parent=1 // pred_check
      _
    $region3: #{tpu_custom_call.1} parent=1 // pred_check_branch
      %13 = sbr.rel (0) target = $region5
    $region4: #{tpu_custom_call.1} parent=1 // pred_region
      %s15 = ssub.s32 16, 16
      %16 = vsyncadd [#allocation3], %s15
      %s18 = sshll.u32 [#allocation2], 4
      %s19 = int_to_ptr.vmem [resolvable:$true] %s18
      %21 = dma.hbm_to_vmem [thread:$0]  %s0, 16, %s19, [#allocation3]
    $region5: #{tpu_custom_call.1} parent=1 // pred_fallthru
      _
    // Predicated region
    $region6: #{tpu_custom_call.1} parent=1 // pred_check
      _
    $region7: #{tpu_custom_call.1} parent=1 // pred_check_branch
      %23 = sbr.rel (0) target = $region9
    $region8: #{tpu_custom_call.1} parent=1 // pred_region
      _
    $region9: #{tpu_custom_call.1} parent=1 // pred_fallthru
      _
    // Predicated region
    $region10: #{tpu_custom_call.1} parent=1 // pred_check
      _
    $region11: #{tpu_custom_call.1} parent=1 // pred_check_branch
      %25 = sbr.rel (0) target = $region13
    $region12: #{tpu_custom_call.1} parent=1 // pred_region
      %s27 = ssub.s32 128, 128
      %28 = vsyncadd [#allocation6], %s27
      %s30 = sshll.u32 [#allocation5], 4
      %s31 = int_to_ptr.vmem [resolvable:$true] %s30
      %33 = dma.hbm_to_vmem [thread:$0]  %s2, 128, %s31, [#allocation6]
    $region13: #{tpu_custom_call.1} parent=1 // pred_fallthru
      _
    // Predicated region
    $region14: #{tpu_custom_call.1} parent=1 // pred_check
      _
    $region15: #{tpu_custom_call.1} parent=1 // pred_check_branch
      %35 = sbr.rel (0) target = $region17
    $region16: #{tpu_custom_call.1} parent=1 // pred_region
      _
    $region17: #{tpu_custom_call.1} parent=1 // pred_fallthru
      _
    // Predicated region
    $region18: #{tpu_custom_call.1} parent=1 // pred_check
      _
    $region19: #{tpu_custom_call.1} parent=1 // pred_check_branch
      %37 = sbr.rel (0) target = $region21
    $region20: #{tpu_custom_call.1} parent=1 // pred_region
      %38 = dma.done [#allocation3], 16
    $region21: #{tpu_custom_call.1} parent=1 // pred_fallthru
      _
    // Predicated region
    $region22: #{tpu_custom_call.1} parent=1 // pred_check
      _
    $region23: #{tpu_custom_call.1} parent=1 // pred_check_branch
      %40 = sbr.rel (0) target = $region25
    $region24: #{tpu_custom_call.1} parent=1 // pred_region
      %41 = dma.done [#allocation6], 128
    $region25: #{tpu_custom_call.1} parent=1 // pred_fallthru
      _
    %v42 = vld [vmem:[#allocation2] sm:$0x1]
    %v43 = vld [vmem:[%s1] sm:$0x1]
    %vm44 = vcmp.ge.u32.totalorder %v43, 2147483648
    %v45 = vmul.f32 %v42, 2.0
    %v46 = vsel %vm44, %v45, 0.0
    %v47 = vld [vmem:[#allocation5] sm:$0x1f]
    %v48 = vld [vmem:[%s3] sm:$0x1]
    %vm49 = vcmask 80896
    %v51 = vsel %vm49, %v46, 0
    %v54 = vsel %vm49, %v47, 0
    %56 = vmatprep.subr.mxu0 0.0
    %57 = vmatpush1.xpose.msra.mxu0 0.0
    %58 = vmatprep.subr.mxu0 0.0
    %59 = vmatpush1.xpose.msra.mxu0 0.0
    %60 = vmatprep.subr.mxu0 0.0
    %61 = vmatpush1.xpose.msra.mxu0 0.0
    %62 = vmatprep.subr.mxu0 0.0
    %63 = vmatpush1.xpose.msra.mxu0 0.0
    %64 = vmatprep.subr.mxu0 0.0
    %65 = vmatpush1.xpose.msra.mxu0 0.0
    %66 = vmatprep.subr.mxu0 0.0
    %67 = vmatpush1.xpose.msra.mxu0 0.0
    %68 = vmatprep.subr.mxu0 0.0
    %69 = vmatpush1.xpose.msra.mxu0 0.0
    %70 = vmatprep.subr.mxu0 0.0
    %71 = vmatpush1.xpose.msra.mxu0 0.0
    %72 = vmatprep.subr.mxu0 0.0
    %73 = vmatpush1.xpose.msra.mxu0 0.0
    %74 = vmatprep.subr.mxu0 0.0
    %75 = vmatpush1.xpose.msra.mxu0 0.0
    %76 = vmatprep.subr.mxu0 0.0
    %77 = vmatpush1.xpose.msra.mxu0 0.0
    %78 = vmatprep.subr.mxu0 0.0
    %79 = vmatpush1.xpose.msra.mxu0 0.0
    %80 = vmatprep.subr.mxu0 0.0
    %81 = vmatpush1.xpose.msra.mxu0 0.0
    %82 = vmatprep.subr.mxu0 0.0
    %83 = vmatpush1.xpose.msra.mxu0 0.0
    %84 = vmatprep.subr.mxu0 0.0
    %85 = vmatpush1.xpose.msra.mxu0 0.0
    %86 = vmatprep.subr.mxu0 0.0
    %87 = vmatpush1.xpose.msra.mxu0 %v54
    %88 = vmatprep.subr.mxu0 0.0
    %89 = vmatpush2.xpose.msra.mxu0 0.0
    %90 = vmatprep.subr.mxu0 0.0
    %91 = vmatpush2.xpose.msra.mxu0 0.0
    %92 = vmatprep.subr.mxu0 0.0
    %93 = vmatpush2.xpose.msra.mxu0 0.0
    %94 = vmatprep.subr.mxu0 0.0
    %95 = vmatpush2.xpose.msra.mxu0 0.0
    %96 = vmatprep.subr.mxu0 0.0
    %97 = vmatpush2.xpose.msra.mxu0 0.0
    %98 = vmatprep.subr.mxu0 0.0
    %99 = vmatpush2.xpose.msra.mxu0 0.0
    %100 = vmatprep.subr.mxu0 0.0
    %101 = vmatpush2.xpose.msra.mxu0 0.0
    %102 = vmatprep.subr.mxu0 0.0
    %103 = vmatpush2.xpose.msra.mxu0 0.0
    %104 = vmatprep.subr.mxu0 0.0
    %105 = vmatpush2.xpose.msra.mxu0 0.0
    %106 = vmatprep.subr.mxu0 0.0
    %107 = vmatpush2.xpose.msra.mxu0 0.0
    %108 = vmatprep.subr.mxu0 0.0
    %109 = vmatpush2.xpose.msra.mxu0 0.0
    %110 = vmatprep.subr.mxu0 0.0
    %111 = vmatpush2.xpose.msra.mxu0 0.0
    %112 = vmatprep.subr.mxu0 0.0
    %113 = vmatpush2.xpose.msra.mxu0 0.0
    %114 = vmatprep.subr.mxu0 0.0
    %115 = vmatpush2.xpose.msra.mxu0 0.0
    %116 = vmatprep.subr.mxu0 0.0
    %117 = vmatpush2.xpose.msra.mxu0 0.0
    %118 = vmatprep.subr.mxu0 0.0
    %119 = vmatpush2.xpose.msra.mxu0 0.0
    %120 = vmatprep.mubr.f32.mxu0 0.0
    %121 = vmatmul.mubr.f32.gmra.mxu0 %v51
    %v122 = vpop.f32.mrf.mxu0
    %v123 = vadd.f32 %v48, %v122
    %v124 = vpop.f32.mrf.mxu0
    %125 = vdwg.mxu0
    %vm126 = vcmask 32768
    %127 = vst.msk [vmem:[#allocation7] sm:$0x1] %vm126, %v123
    // Predicated region
    $region26: #{tpu_custom_call.1} parent=1 // pred_check
      _
    $region27: #{tpu_custom_call.1} parent=1 // pred_check_branch
      %129 = sbr.rel (0) target = $region29
    $region28: #{tpu_custom_call.1} parent=1 // pred_region
      %s131 = ssub.s32 16, 16
      %132 = vsyncadd [#allocation4], %s131
      %s134 = sshll.u32 [#allocation7], 4
      %s135 = int_to_ptr.vmem [resolvable:$true] %s134
      %137 = dma.vmem_to_hbm [thread:$0]  %s135, 16, %s4, [#allocation4]
    $region29: #{tpu_custom_call.1} parent=1 // pred_fallthru
      _
    // Predicated region
    $region30: #{tpu_custom_call.1} parent=1 // pred_check
      _
    $region31: #{tpu_custom_call.1} parent=1 // pred_check_branch
      %139 = sbr.rel (0) target = $region33
    $region32: #{tpu_custom_call.1} parent=1 // pred_region
      %140 = dma.done [#allocation4], 16
    $region33: #{tpu_custom_call.1} parent=1 // pred_fallthru
      _
    %141 = vsyncpa [#allocation3], 1
    %142 = vsyncpa [#allocation6], 1
    %143 = vsyncpa [#allocation4], 1

</llo_original>
